<compile_context>
chip_gen: v5e
topology: v5e:2x2
jax: 0.10.0
libtpu: 0.0.40
codegen_flags: <defaults>
</compile_context>

<pallas_src>
import jax
import jax.numpy as jnp
from jax.experimental import pallas as pl
from jax.experimental.pallas import tpu as pltpu

INPUT_KEY = "input"
PREDICTIONS_KEY = "predictions"

_LANE_WIDTHS = (4096, 2048, 1024, 512, 256, 128)
# Per-buffer block budget. With double-buffered input + output (4 buffers)
# this stays well under the 32 MiB scoped-VMEM default on every generation,
# including v7x (64 MiB physical VMEM).
_TARGET_BLOCK_BYTES = 4 * 1024 * 1024


def _identity_copy_kernel(x_ref, o_ref):
    # Abstract IDLModel forward contract: predictions <- input tensor.
    o_ref[...] = x_ref[...]


def _lane_dense_2d(x: jax.Array) -> jax.Array:
    """Flatten to (rows, lanes) with lanes a large multiple of 128 when possible."""
    total = x.size
    # Prefer a lane width that also leaves >= 8 rows (dense sublanes); fall
    # back to any lane width that divides the element count.
    for want_rows in (8, 1):
        for lane in _LANE_WIDTHS:
            if total % lane == 0 and total // lane >= want_rows:
                return x.reshape(total // lane, lane)
    # TODO(synk): element count not divisible by 128 -> not lane-dense; keep
    # the original last dim as the lane axis (full-extent block, still legal).
    lead = total // x.shape[-1]
    return x.reshape(lead, x.shape[-1])


def _row_tile(num_rows: int, num_cols: int, itemsize: int) -> int:
    """Pick a row-tile that is ~_TARGET_BLOCK_BYTES and sublane-aligned."""
    # Sublane granularity: f32 -> 8 rows, bf16 -> 16, int8/fp8 -> 32.
    sub = 8 * max(1, 4 // max(1, itemsize))
    row_bytes = max(1, num_cols * itemsize)
    tm = (_TARGET_BLOCK_BYTES // row_bytes) // sub * sub
    tm = max(sub, tm)
    if tm >= num_rows:
        return num_rows  # full extent is always a legal block dim
    return tm


@jax.jit
def idl_model_forward(x: jax.Array) -> jax.Array:
    """Pallas-backed forward for the (abstract) IDLModel data path.

    x: NCHW tensor (B, C, H, W). Returns a tensor of identical shape/dtype.
    """
    orig_shape = x.shape
    x2d = _lane_dense_2d(x)
    M, N = x2d.shape
    itemsize = jnp.dtype(x2d.dtype).itemsize
    TM = _row_tile(M, N, itemsize)

    out2d = pl.pallas_call(
        _identity_copy_kernel,
        out_shape=jax.ShapeDtypeStruct((M, N), x2d.dtype),
        grid_spec=pltpu.PrefetchScalarGridSpec(
            num_scalar_prefetch=0,
            grid=(pl.cdiv(M, TM),),
            in_specs=[pl.BlockSpec((TM, N), lambda i: (i, 0))],
            out_specs=pl.BlockSpec((TM, N), lambda i: (i, 0)),
        ),
        # Identity contract: let XLA alias output onto input when possible.
        input_output_aliases={0: 0},
        cost_estimate=pl.CostEstimate(
            flops=0,
            transcendentals=0,
            bytes_accessed=2 * x.size * itemsize,
        ),
        compiler_params=pltpu.CompilerParams(
            # Parallel row axis -> v7x megacore splits the copy; no-op on
            # single-TC v5e/v6e.
            dimension_semantics=("parallel",),
        ),
    )(x2d)

    return out2d.reshape(orig_shape)


def idl_model_run(batch_idx: int, batch: dict) -> dict:
    """Mirrors IDLModel.run / postprocess: tensor result -> {PREDICTIONS_KEY: ...}."""
    forward_results = idl_model_forward(batch[INPUT_KEY])
    return {PREDICTIONS_KEY: forward_results}


if __name__ == "__main__":
    key = jax.random.PRNGKey(0)
    x = jax.random.normal(key, (2, 4, 16, 16), dtype=jnp.float32)  # NCHW

    batch = {INPUT_KEY: x}
    outputs = idl_model_run(0, batch)
    preds = outputs[PREDICTIONS_KEY]
    jax.block_until_ready(preds)

    # Sanity check: abstract-base forward contract is a bit-exact pass-through.
    assert preds.shape == x.shape and preds.dtype == x.dtype
    assert bool(jnp.array_equal(preds, x))

    print("KERNEL_OK")
</pallas_src>

<mosaic_0001>
module attributes {stable_mosaic.version = 11 : i64} {
  func.func @_identity_copy_kernel(%arg0: i32, %arg1: memref<8x256xf32, #tpu.memory_space<vmem>>, %arg2: memref<8x256xf32, #tpu.memory_space<vmem>>) attributes {dimension_semantics = [#tpu.dimension_semantics<parallel>], iteration_bounds = array<i64: 1>, scalar_prefetch = 0 : i64, scratch_operands = 0 : i64, tpu.core_type = #tpu.core_type<tc>, window_params = [{transform_indices = @transform_0, window_bounds = array<i64: 8, 256>}, {transform_indices = @transform_1, window_bounds = array<i64: 8, 256>}]} {
    %c0 = arith.constant 0 : index
    %c0_0 = arith.constant 0 : index
    %0 = vector.load %arg1[%c0, %c0_0] : memref<8x256xf32, #tpu.memory_space<vmem>>, vector<8x256xf32>
    %c0_1 = arith.constant 0 : index
    %c0_2 = arith.constant 0 : index
    %1 = vector.load %arg2[%c0_1, %c0_2] : memref<8x256xf32, #tpu.memory_space<vmem>>, vector<8x256xf32>
    tpu.vector_store %arg2[%c0_1, %c0_2], %0 {strides = array<i32>} : memref<8x256xf32, #tpu.memory_space<vmem>>, vector<8x256xf32>,
    return
  }
  func.func @transform_0(%arg0: i32) -> (i32, i32) {
    %c0_i32 = arith.constant 0 : i32
    %c0_i32_0 = arith.constant 0 : i32
    return %arg0, %c0_i32 : i32, i32
  }
  func.func @transform_1(%arg0: i32) -> (i32, i32) {
    %c0_i32 = arith.constant 0 : i32
    %c0_i32_0 = arith.constant 0 : i32
    return %arg0, %c0_i32 : i32, i32
  }
}

</mosaic_0001>

<llo_original>
// kernel: idl_model_forward.1
$region0: #{idl_model_forward.1}
  #allocation0 [shape = 'u32[]', space=smem, size = 0x4, offset = 0x4, fixed_abs, tag = 'smem constant byte address 0x4 - core index']
  #allocation1 [shape = 'u32[72,128]{1,0:T(1,128)}', space=vmem, size = 0x9000, scoped, tag = 'internal scratch']
  %s0 = inlined_call_operand.vmem [shape: f32[8,256], index: 0, kind: input, shape index: {}, may-alias: {0,1}]
  %s1 = inlined_call_operand.vmem [shape: f32[8,256], index: 1, kind: output, shape index: {}, may-alias: {0,1}]
  %s2 = sld [smem:[#allocation0]]
  $region14: #{idl_model_forward.1} parent=0
    _
  %s4 = ssub.s32 1, %s2
  %s5 = scalar_select 0, %s4, %s2
  // Predicated region
  $region2: #{idl_model_forward.1} parent=0 // pred_check
    _
  $region3: #{idl_model_forward.1} parent=0 // pred_check_branch
    %7 = sbr.rel (0) target = $region5
  $region4: #{idl_model_forward.1} parent=0 // pred_region
    _
  $region5: #{idl_model_forward.1} parent=0 // pred_fallthru
    _
  %v8 = vld [vmem:[%s0] sm:$0xff]
  %v9 = vld [vmem:[%s0 + $0x8] sm:$0xff]
  %10 = vst [vmem:[%s1] sm:$0xff] %v8
  %11 = vst [vmem:[%s1 + $0x8] sm:$0xff] %v9
  // Predicated region
  $region6: #{idl_model_forward.1} parent=0 // pred_check
    _
  $region7: #{idl_model_forward.1} parent=0 // pred_check_branch
    %13 = sbr.rel (0) target = $region9
  $region8: #{idl_model_forward.1} parent=0 // pred_region
    _
  $region9: #{idl_model_forward.1} parent=0 // pred_fallthru
    _
  // Predicated region
  $region10: #{idl_model_forward.1} parent=0 // pred_check
    _
  $region11: #{idl_model_forward.1} parent=0 // pred_check_branch
    %15 = sbr.rel (0) target = $region13
  $region12: #{idl_model_forward.1} parent=0 // pred_region
    _
  $region13: #{idl_model_forward.1} parent=0 // pred_fallthru
    _

</llo_original>
